<compile_context>
chip_gen: v6e
topology: v6e:2x2x1
jax: 0.10.0
libtpu: 0.0.40
codegen_flags: <defaults>
</compile_context>

<pallas_src>
import functools

import jax
import jax.numpy as jnp
import numpy as np
from jax import lax
from jax.experimental import pallas as pl
from jax.experimental.pallas import tpu as pltpu

_DEG_PER_RAD = 180.0 / np.pi
_CLAMP_EPS = 1e-7        # torch.clamp(-1+1e-7, 1-1e-7)
_NORM_EPS = 1e-12        # F.normalize default eps (reference only)

_LANE = 128
_SUBLANE = 8
_MAX_TILE_ROWS = 1024    # 4 cols x 1024 x 128 x 4B = 2 MiB/block, x2 buffers = 4 MiB VMEM


def _round_up(x, m):
    return pl.cdiv(x, m) * m


def _angular_loss_kernel(slab_ref, out_ref, acc_ref, *,
                         n_valid, tile_rows, tiles_per_group):
    j = pl.program_id(1)

    @pl.when(j == 0)
    def _():
        acc_ref[...] = jnp.zeros_like(acc_ref)

    az_p = slab_ref[0]
    el_p = slab_ref[1]
    az_t = slab_ref[2]
    el_t = slab_ref[3]

    # Spherical law of cosines via product-to-sum (3 transcendentals, not 5):
    #   dot = sin(ep)sin(et)cos(daz) + cos(ep)cos(et)
    #       = 0.5*cos(ep-et)*(1+cos(daz)) + 0.5*cos(ep+et)*(1-cos(daz))
    cos_daz = jnp.cos(az_p - az_t)
    dot = 0.5 * (jnp.cos(el_p - el_t) * (1.0 + cos_daz)
                 + jnp.cos(el_p + el_t) * (1.0 - cos_daz))
    dot = jnp.clip(dot, -1.0 + _CLAMP_EPS, 1.0 - _CLAMP_EPS)
    # acos(x) == atan2(sqrt(1-x^2), x) for x in (-1, 1).
    # TODO(synk): half-angle form 2*atan(sqrt((1-x)/(1+x))) would drop atan2's
    # quadrant logic, but single-arg atan has no reliable Mosaic lowering.
    angle_deg = jnp.arctan2(jnp.sqrt(1.0 - dot * dot), dot) * _DEG_PER_RAD

    sub_tiles = tile_rows // _SUBLANE
    tile_idx = pl.program_id(0) * tiles_per_group + j
    tile_start = tile_idx * (tile_rows * _LANE)
    has_pad = tile_start + tile_rows * _LANE > n_valid

    # Fast path: tiles fully inside the valid range skip all masking work.
    @pl.when(jnp.logical_not(has_pad))
    def _():
        acc_ref[...] += jnp.sum(
            angle_deg.reshape(sub_tiles, _SUBLANE, _LANE), axis=0)

    # Slow path: only tiles overlapping the padded tail pay for iota + select.
    @pl.when(has_pad)
    def _():
        rows_i = lax.broadcasted_iota(jnp.int32, angle_deg.shape, 0)
        lanes = lax.broadcasted_iota(jnp.int32, angle_deg.shape, 1)
        gidx = tile_start + rows_i * _LANE + lanes
        masked = jnp.where(gidx < n_valid, angle_deg, 0.0)
        acc_ref[...] += jnp.sum(
            masked.reshape(sub_tiles, _SUBLANE, _LANE), axis=0)

    # Write the (8,128) per-group partial once; the cross-lane/sublane reduce
    # happens in the wrapper instead of inside the grid loop.
    @pl.when(j == pl.num_programs(1) - 1)
    def _():
        out_ref[0] = acc_ref[...]


def angular_loss(y_pred, y_true, reduction="mean",
                 max_tile_rows=_MAX_TILE_ROWS, num_core_groups=2):
    """y_pred, y_true: (N, 2); column 0 = azimuth, column 1 = elevation (radians)."""
    # TODO(synk): reduction='none' (per-element angle output) is not fused in-kernel.
    assert reduction in ("mean", "sum")
    y_pred = jnp.asarray(y_pred)
    y_true = jnp.asarray(y_true)
    n = y_pred.shape[0]
    if n == 0:  # torch: mean of empty -> nan, sum of empty -> 0
        return jnp.float32(np.nan) if reduction == "mean" else jnp.float32(0.0)

    # Lane/sublane-dense tiling: 128 samples per row, rows a multiple of 8.
    rows_data = _round_up(max(1, pl.cdiv(n, _LANE)), _SUBLANE)
    # Leading 'parallel' axis shards across TensorCores on v7x (no-op on 1 TC).
    groups = num_core_groups if rows_data >= num_core_groups * _SUBLANE else 1
    tile_rows = max(_SUBLANE,
                    min(max_tile_rows,
                        _round_up(pl.cdiv(rows_data, groups), _SUBLANE)))
    tiles_per_group = pl.cdiv(rows_data, groups * tile_rows)
    rows = groups * tiles_per_group * tile_rows

    # Single packed slab (4, rows, 128): one prep op / one DMA stream per tile.
    cols = jnp.stack([y_pred[:, 0], y_pred[:, 1], y_true[:, 0], y_true[:, 1]],
                     axis=0).astype(jnp.float32)
    pad = rows * _LANE - n
    if pad:
        cols = jnp.pad(cols, ((0, 0), (0, pad)))
    slab = cols.reshape(4, rows, _LANE)

    kernel = functools.partial(_angular_loss_kernel, n_valid=n,
                               tile_rows=tile_rows,
                               tiles_per_group=tiles_per_group)

    partials = pl.pallas_call(
        kernel,
        out_shape=jax.ShapeDtypeStruct((groups, _SUBLANE, _LANE), jnp.float32),
        grid_spec=pltpu.PrefetchScalarGridSpec(
            num_scalar_prefetch=0,
            grid=(groups, tiles_per_group),
            in_specs=[pl.BlockSpec(
                (4, tile_rows, _LANE),
                lambda g, j: (0, g * tiles_per_group + j, 0))],
            out_specs=pl.BlockSpec((1, _SUBLANE, _LANE),
                                   lambda g, j: (g, 0, 0)),
            scratch_shapes=[pltpu.VMEM((_SUBLANE, _LANE), jnp.float32)],
        ),
        compiler_params=pltpu.CompilerParams(
            # Group axis can shard across cores; tile axis carries the running
            # accumulator so it must stay 'arbitrary'.
            dimension_semantics=("parallel", "arbitrary")),
    )(slab)

    total = jnp.sum(partials)
    scale = (1.0 / n) if reduction == "mean" else 1.0
    return total * scale


def _angular_loss_ref(y_pred, y_true, reduction="mean"):
    """Pure-JAX reference mirroring the PyTorch forward exactly."""
    az_p, el_p = y_pred[:, 0], y_pred[:, 1]
    pv = jnp.stack(
        [jnp.sin(el_p) * jnp.cos(az_p), jnp.sin(el_p) * jnp.sin(az_p), jnp.cos(el_p)],
        axis=1,
    )
    pv = pv / jnp.maximum(jnp.linalg.norm(pv, axis=1, keepdims=True), _NORM_EPS)
    az_t, el_t = y_true[:, 0], y_true[:, 1]
    tv = jnp.stack(
        [jnp.sin(el_t) * jnp.cos(az_t), jnp.sin(el_t) * jnp.sin(az_t), jnp.cos(el_t)],
        axis=1,
    )
    tv = tv / jnp.maximum(jnp.linalg.norm(tv, axis=1, keepdims=True), _NORM_EPS)
    dot = jnp.clip(jnp.sum(pv * tv, axis=1), -1.0 + _CLAMP_EPS, 1.0 - _CLAMP_EPS)
    ang = jnp.arccos(dot) * _DEG_PER_RAD
    return jnp.mean(ang) if reduction == "mean" else jnp.sum(ang)


if __name__ == "__main__":
    key = jax.random.PRNGKey(0)
    k1, k2, k3, k4 = jax.random.split(key, 4)

    # Case 1: tiny batch, module default reduction ('mean'), single tile/group.
    N1 = 8
    yp1 = jax.random.uniform(k1, (N1, 2), jnp.float32, minval=-np.pi, maxval=np.pi)
    yt1 = jax.random.uniform(k2, (N1, 2), jnp.float32, minval=-np.pi, maxval=np.pi)
    out1 = jax.block_until_ready(angular_loss(yp1, yt1))
    ref1 = _angular_loss_ref(yp1, yt1)
    np.testing.assert_allclose(np.asarray(out1), np.asarray(ref1), rtol=1e-4, atol=1e-3)

    # Case 2: ragged batch over both core groups with small tiles -> exercises
    # the multi-tile accumulator, fully-padded tiles and the masked slow path.
    N2 = 3000
    yp2 = jax.random.uniform(k3, (N2, 2), jnp.float32, minval=-np.pi, maxval=np.pi)
    yt2 = jax.random.uniform(k4, (N2, 2), jnp.float32, minval=-np.pi, maxval=np.pi)
    out2 = jax.block_until_ready(angular_loss(yp2, yt2, max_tile_rows=8))
    ref2 = _angular_loss_ref(yp2, yt2)
    np.testing.assert_allclose(np.asarray(out2), np.asarray(ref2), rtol=1e-4, atol=1e-3)

    # Case 3: 'sum' reduction with default tiling parameters.
    out3 = jax.block_until_ready(angular_loss(yp2, yt2, reduction="sum"))
    ref3 = _angular_loss_ref(yp2, yt2, reduction="sum")
    np.testing.assert_allclose(np.asarray(out3), np.asarray(ref3), rtol=1e-4)

    print("KERNEL_OK")
</pallas_src>

<mosaic_0001>
module attributes {stable_mosaic.version = 11 : i64} {
  func.func @_angular_loss_kernel(%arg0: i32, %arg1: i32, %arg2: memref<4x8x128xf32, #tpu.memory_space<vmem>>, %arg3: memref<1x8x128xf32, #tpu.memory_space<vmem>>, %arg4: memref<8x128xf32, #tpu.memory_space<vmem>>) attributes {dimension_semantics = [#tpu.dimension_semantics<parallel>, #tpu.dimension_semantics<arbitrary>], iteration_bounds = array<i64: 1, 1>, scalar_prefetch = 0 : i64, scratch_operands = 1 : i64, tpu.core_type = #tpu.core_type<tc>, window_params = [{transform_indices = @transform_0, window_bounds = array<i64: 4, 8, 128>}, {transform_indices = @transform_1, window_bounds = array<i64: 1, 8, 128>}]} {
    %c0_i32 = arith.constant 0 : i32
    %0 = arith.cmpi eq, %arg1, %c0_i32 : i32
    %1 = arith.extui %0 : i1 to i32
    %c0_i32_0 = arith.constant 0 : i32
    %2 = arith.cmpi ne, %1, %c0_i32_0 : i32
    scf.if %2 {
      %cst_20 = arith.constant 0.000000e+00 : f32
      %50 = vector.broadcast %cst_20 : f32 to vector<8x128xf32>
      %c0_21 = arith.constant 0 : index
      %c0_22 = arith.constant 0 : index
      %51 = vector.load %arg4[%c0_21, %c0_22] : memref<8x128xf32, #tpu.memory_space<vmem>>, vector<8x128xf32>
      tpu.vector_store %arg4[%c0_21, %c0_22], %50 {strides = array<i32>} : memref<8x128xf32, #tpu.memory_space<vmem>>, vector<8x128xf32>,
    } else {
    }
    %c0 = arith.constant 0 : index
    %c0_1 = arith.constant 0 : index
    %c0_2 = arith.constant 0 : index
    %3 = vector.load %arg2[%c0, %c0_1, %c0_2] : memref<4x8x128xf32, #tpu.memory_space<vmem>>, vector<1x8x128xf32>
    %4 = vector.shape_cast %3 : vector<1x8x128xf32> to vector<8x128xf32>
    %c1 = arith.constant 1 : index
    %c0_3 = arith.constant 0 : index
    %c0_4 = arith.constant 0 : index
    %5 = vector.load %arg2[%c1, %c0_3, %c0_4] : memref<4x8x128xf32, #tpu.memory_space<vmem>>, vector<1x8x128xf32>
    %6 = vector.shape_cast %5 : vector<1x8x128xf32> to vector<8x128xf32>
    %c2 = arith.constant 2 : index
    %c0_5 = arith.constant 0 : index
    %c0_6 = arith.constant 0 : index
    %7 = vector.load %arg2[%c2, %c0_5, %c0_6] : memref<4x8x128xf32, #tpu.memory_space<vmem>>, vector<1x8x128xf32>
    %8 = vector.shape_cast %7 : vector<1x8x128xf32> to vector<8x128xf32>
    %c3 = arith.constant 3 : index
    %c0_7 = arith.constant 0 : index
    %c0_8 = arith.constant 0 : index
    %9 = vector.load %arg2[%c3, %c0_7, %c0_8] : memref<4x8x128xf32, #tpu.memory_space<vmem>>, vector<1x8x128xf32>
    %10 = vector.shape_cast %9 : vector<1x8x128xf32> to vector<8x128xf32>
    %11 = arith.subf %4, %8 : vector<8x128xf32>
    %12 = math.cos %11 : vector<8x128xf32>
    %13 = arith.subf %6, %10 : vector<8x128xf32>
    %14 = math.cos %13 : vector<8x128xf32>
    %cst = arith.constant 1.000000e+00 : f32
    %15 = vector.broadcast %cst : f32 to vector<8x128xf32>
    %16 = arith.addf %15, %12 : vector<8x128xf32>
    %17 = arith.mulf %14, %16 : vector<8x128xf32>
    %18 = arith.addf %6, %10 : vector<8x128xf32>
    %19 = math.cos %18 : vector<8x128xf32>
    %cst_9 = arith.constant 1.000000e+00 : f32
    %20 = vector.broadcast %cst_9 : f32 to vector<8x128xf32>
    %21 = arith.subf %20, %12 : vector<8x128xf32>
    %22 = arith.mulf %19, %21 : vector<8x128xf32>
    %23 = arith.addf %17, %22 : vector<8x128xf32>
    %cst_10 = arith.constant 5.000000e-01 : f32
    %24 = vector.broadcast %cst_10 : f32 to vector<8x128xf32>
    %25 = arith.mulf %24, %23 : vector<8x128xf32>
    %cst_11 = arith.constant -0.99999988 : f32
    %cst_12 = arith.constant 0.99999988 : f32
    %26 = vector.broadcast %cst_11 : f32 to vector<8x128xf32>
    %27 = arith.maximumf %26, %25 : vector<8x128xf32>
    %28 = vector.broadcast %cst_12 : f32 to vector<8x128xf32>
    %29 = arith.minimumf %28, %27 : vector<8x128xf32>
    %30 = arith.mulf %29, %29 : vector<8x128xf32>
    %cst_13 = arith.constant 1.000000e+00 : f32
    %31 = vector.broadcast %cst_13 : f32 to vector<8x128xf32>
    %32 = arith.subf %31, %30 : vector<8x128xf32>
    %33 = math.sqrt %32 : vector<8x128xf32>
    %34 = math.atan2 %33, %29 : vector<8x128xf32>
    %cst_14 = arith.constant 57.2957802 : f32
    %35 = vector.broadcast %cst_14 : f32 to vector<8x128xf32>
    %36 = arith.mulf %34, %35 : vector<8x128xf32>
    %c1_i32 = arith.constant 1 : i32
    %37 = arith.muli %arg0, %c1_i32 : i32
    %38 = arith.addi %37, %arg1 : i32
    %c1024_i32 = arith.constant 1024 : i32
    %39 = arith.muli %38, %c1024_i32 : i32
    %c1024_i32_15 = arith.constant 1024 : i32
    %40 = arith.addi %39, %c1024_i32_15 : i32
    %c8_i32 = arith.constant 8 : i32
    %41 = arith.cmpi sgt, %40, %c8_i32 : i32
    %true = arith.constant true
    %42 = arith.xori %41, %true : i1
    %43 = arith.extui %42 : i1 to i32
    %c0_i32_16 = arith.constant 0 : i32
    %44 = arith.cmpi ne, %43, %c0_i32_16 : i32
    scf.if %44 {
      %c0_20 = arith.constant 0 : index
      %c0_21 = arith.constant 0 : index
      %50 = vector.load %arg4[%c0_20, %c0_21] : memref<8x128xf32, #tpu.memory_space<vmem>>, vector<8x128xf32>
      %51 = vector.shape_cast %36 : vector<8x128xf32> to vector<1x8x128xf32>
      %cst_22 = arith.constant dense<0.000000e+00> : vector<8x128xf32>
      %52 = vector.multi_reduction <add>, %51, %cst_22 [0] : vector<1x8x128xf32> to vector<8x128xf32>
      %53 = arith.addf %50, %52 : vector<8x128xf32>
      %c0_23 = arith.constant 0 : index
      %c0_24 = arith.constant 0 : index
      %54 = vector.load %arg4[%c0_23, %c0_24] : memref<8x128xf32, #tpu.memory_space<vmem>>, vector<8x128xf32>
      tpu.vector_store %arg4[%c0_23, %c0_24], %53 {strides = array<i32>} : memref<8x128xf32, #tpu.memory_space<vmem>>, vector<8x128xf32>,
    } else {
    }
    %45 = arith.extui %41 : i1 to i32
    %c0_i32_17 = arith.constant 0 : i32
    %46 = arith.cmpi ne, %45, %c0_i32_17 : i32
    scf.if %46 {
      %50 = tpu.iota {dimensions = array<i32: 0>} : vector<8x128xi32>
      %51 = tpu.iota {dimensions = array<i32: 1>} : vector<8x128xi32>
      %c128_i32 = arith.constant 128 : i32
      %52 = vector.broadcast %c128_i32 : i32 to vector<8x128xi32>
      %53 = arith.muli %50, %52 : vector<8x128xi32>
      %54 = vector.broadcast %39 : i32 to vector<8x128xi32>
      %55 = arith.addi %54, %53 : vector<8x128xi32>
      %56 = arith.addi %55, %51 : vector<8x128xi32>
      %c8_i32_20 = arith.constant 8 : i32
      %57 = vector.broadcast %c8_i32_20 : i32 to vector<8x128xi32>
      %58 = arith.cmpi slt, %56, %57 : vector<8x128xi32>
      %cst_21 = arith.constant 0.000000e+00 : f32
      %59 = vector.broadcast %cst_21 : f32 to vector<8x128xf32>
      %60 = arith.select %58, %36, %59 : vector<8x128xi1>, vector<8x128xf32>
      %c0_22 = arith.constant 0 : index
      %c0_23 = arith.constant 0 : index
      %61 = vector.load %arg4[%c0_22, %c0_23] : memref<8x128xf32, #tpu.memory_space<vmem>>, vector<8x128xf32>
      %62 = vector.shape_cast %60 : vector<8x128xf32> to vector<1x8x128xf32>
      %cst_24 = arith.constant dense<0.000000e+00> : vector<8x128xf32>
      %63 = vector.multi_reduction <add>, %62, %cst_24 [0] : vector<1x8x128xf32> to vector<8x128xf32>
      %64 = arith.addf %61, %63 : vector<8x128xf32>
      %c0_25 = arith.constant 0 : index
      %c0_26 = arith.constant 0 : index
      %65 = vector.load %arg4[%c0_25, %c0_26] : memref<8x128xf32, #tpu.memory_space<vmem>>, vector<8x128xf32>
      tpu.vector_store %arg4[%c0_25, %c0_26], %64 {strides = array<i32>} : memref<8x128xf32, #tpu.memory_space<vmem>>, vector<8x128xf32>,
    } else {
    }
    %c0_i32_18 = arith.constant 0 : i32
    %47 = arith.cmpi eq, %arg1, %c0_i32_18 : i32
    %48 = arith.extui %47 : i1 to i32
    %c0_i32_19 = arith.constant 0 : i32
    %49 = arith.cmpi ne, %48, %c0_i32_19 : i32
    scf.if %49 {
      %c0_20 = arith.constant 0 : index
      %c0_21 = arith.constant 0 : index
      %50 = vector.load %arg4[%c0_20, %c0_21] : memref<8x128xf32, #tpu.memory_space<vmem>>, vector<8x128xf32>
      %c0_22 = arith.constant 0 : index
      %c0_23 = arith.constant 0 : index
      %c0_24 = arith.constant 0 : index
      %51 = vector.load %arg3[%c0_22, %c0_23, %c0_24] : memref<1x8x128xf32, #tpu.memory_space<vmem>>, vector<1x8x128xf32>
      %52 = vector.shape_cast %51 : vector<1x8x128xf32> to vector<8x128xf32>
      %53 = vector.shape_cast %50 : vector<8x128xf32> to vector<1x8x128xf32>
      tpu.vector_store %arg3[%c0_22, %c0_23, %c0_24], %53 {strides = array<i32>} : memref<1x8x128xf32, #tpu.memory_space<vmem>>, vector<1x8x128xf32>,
    } else {
    }
    return
  }
  func.func @transform_0(%arg0: i32, %arg1: i32) -> (i32, i32, i32) {
    %c1_i32 = arith.constant 1 : i32
    %0 = arith.muli %arg0, %c1_i32 : i32
    %1 = arith.addi %0, %arg1 : i32
    %c0_i32 = arith.constant 0 : i32
    %c0_i32_0 = arith.constant 0 : i32
    %c0_i32_1 = arith.constant 0 : i32
    return %c0_i32, %1, %c0_i32_0 : i32, i32, i32
  }
  func.func @transform_1(%arg0: i32, %arg1: i32) -> (i32, i32, i32) {
    %c0_i32 = arith.constant 0 : i32
    %c0_i32_0 = arith.constant 0 : i32
    %c0_i32_1 = arith.constant 0 : i32
    return %arg0, %c0_i32, %c0_i32_0 : i32, i32, i32
  }
}

</mosaic_0001>

<llo_original>
// kernel: tpu_custom_call.1
$region0: #{tpu_custom_call.1}
  #allocation0 [shape = 'u32[]', space=smem, size = 0x4, offset = 0x4, fixed_abs, tag = 'smem constant byte address 0x4 - core index']
  #allocation1 [shape = 'u32[144,128]{1,0:T(1,128)}', space=vmem, size = 0x12000, scoped, tag = 'internal scratch']
  #allocation2 [shape = 'f32[8,128]{1,0:T(8,128)}', space=vmem, size = 0x1000, scoped, tag = 'scratch operand']
  %s0 = inlined_call_operand.hbm [shape: f32[4,8,128], index: 0, kind: input, shape index: {}]
  %s1 = inlined_call_operand.hbm [shape: f32[1,8,128], index: 1, kind: output, shape index: {}]
  %s2 = sld [smem:[#allocation0]]
  $region34: #{tpu_custom_call.1} parent=0
    _
  %s4 = ssub.s32 1, %s2
  %s5 = scalar_select 0, %s4, %s2
  $region1: #{tpu_custom_call.1} parent=0
    #allocation3 [shape = 'u8[16384]{0}', space=vmem, size = 0x4000, scoped, tag = 'input window, operand 0, single buffered']
    #allocation4 [shape = 's32[1]{0}', space=sflag, size = 0x4, scoped, tag = 'scoped memory for tpu_custom_call.1']
    #allocation5 [shape = 's32[1]{0}', space=sflag, size = 0x4, scoped, tag = 'scoped memory for tpu_custom_call.1']
    #allocation6 [shape = 'u8[4096]{0}', space=vmem, size = 0x1000, scoped, tag = 'output window, operand 0, single buffered']
    %6 = vsyncpa [#allocation4], 0
    %7 = vsyncpa [#allocation5], 0
    // Predicated region
    $region2: #{tpu_custom_call.1} parent=1 // pred_check
      _
    $region3: #{tpu_custom_call.1} parent=1 // pred_check_branch
      %9 = sbr.rel (0) target = $region5
    $region4: #{tpu_custom_call.1} parent=1 // pred_region
      %s10 = sadd.s32 0, 0
      %s12 = ssub.s32 512, 512
      %13 = vsyncadd [#allocation4], %s12
      %s14 = smul.addr %s10, 128
      %s15 = scalar_lea.hbm %s0, %s14
      %s16 = sshll.u32 [#allocation3], 4
      %s17 = int_to_ptr.vmem [resolvable:$true] %s16
      %22 = dma.hbm_to_vmem [thread:$0]  %s15, 512, %s17, [#allocation4], 128, 128, 8
    $region5: #{tpu_custom_call.1} parent=1 // pred_fallthru
      _
    // Predicated region
    $region6: #{tpu_custom_call.1} parent=1 // pred_check
      _
    $region7: #{tpu_custom_call.1} parent=1 // pred_check_branch
      %24 = sbr.rel (0) target = $region9
    $region8: #{tpu_custom_call.1} parent=1 // pred_region
      %25 = dma.done [#allocation4], 512
    $region9: #{tpu_custom_call.1} parent=1 // pred_fallthru
      _
    %s26 = sadd.s32 0, 0
    %p27 = scmp.eq.s32.totalorder 0, 0
    // Predicated region
    $region10: #{tpu_custom_call.1} parent=1 // pred_check
      %p28 = pneg %p27
    $region11: #{tpu_custom_call.1} parent=1 // pred_check_branch
      %30 = sbr.rel (%p28) target = $region13
    $region12: #{tpu_custom_call.1} parent=1 // pred_region
      %31 = vst [vmem:[#allocation2] sm:$0xff] 0.0
    $region13: #{tpu_custom_call.1} parent=1 // pred_fallthru
      _
    %v32 = vld [vmem:[#allocation3] sm:$0xff]
    %s33 = scalar_lea.vmem [#allocation3], 8
    %v34 = vld [vmem:[%s33] sm:$0xff]
    %s35 = scalar_lea.vmem [#allocation3], 16
    %v36 = vld [vmem:[%s35] sm:$0xff]
    %s37 = scalar_lea.vmem [#allocation3], 24
    %v38 = vld [vmem:[%s37] sm:$0xff]
    %v39 = vsub.f32 %v32, %v36
    %v40 = vand.u32 2147483647, %v39
    %vm41 = vcmp.le.f32.partialorder %v40, 0.7853982
    %vm42 = vcmp.lt.s32.totalorder %v39, 0
    %v43 = vand.u32 %v39, 2139095040
    %v44 = vshrl.u32 %v43, 23
    %v45 = vsub.s32 %v44, 127
    %v46 = vand.u32 2147483647, %v39
    %v47 = vand.u32 %v46, 8388607
    %v48 = vor.u32 %v47, 8388608
    %v49 = vsub.s32 0, %v48
    %v50 = vadd.s32 %v45, 1
    %vm51 = vcmp.gt.s32.totalorder %v50, 0
    %v52 = vsel %vm51, %v50, 0
    %v53 = vshrl.u32 %v52, 5
    %v54 = vand.u32 %v52, 31
    %v55 = vsub.s32 32, %v54
    %v56 = vshrl.u32 683565275, %v55
    %v57 = vshll.u32 683565275, %v54
    %v58 = vshrl.u32 2475754826, %v55
    %v59 = vor.u32 %v57, %v58
    %v60 = vshll.u32 2475754826, %v54
    %v61 = vshrl.u32 2131351028, %v55
    %v62 = vor.u32 %v60, %v61
    %v63 = vshll.u32 2131351028, %v54
    %v64 = vshrl.u32 2102212464, %v55
    %v65 = vor.u32 %v63, %v64
    %v66 = vshll.u32 2102212464, %v54
    %v67 = vshrl.u32 920167782, %v55
    %v68 = vor.u32 %v66, %v67
    %v69 = vshll.u32 920167782, %v54
    %v70 = vshrl.u32 1326507024, %v55
    %v71 = vor.u32 %v69, %v70
    %vm72 = vcmp.lt.s32.totalorder %v53, 1
    %vm73 = vcmp.lt.s32.totalorder %v53, 2
    %vm74 = vcmp.lt.s32.totalorder %v53, 3
    %vm75 = vcmp.lt.s32.totalorder %v53, 4
    %v76 = vsel %vm72, %v56, %v59
    %v77 = vsel %vm75, %v65, 2102212464
    %v78 = vsel %vm74, %v62, %v77
    %v79 = vsel %vm73, %v76, %v78
    %v80 = vsel %vm72, %v59, %v62
    %v81 = vsel %vm75, %v68, 920167782
    %v82 = vsel %vm74, %v65, %v81
    %v83 = vsel %vm73, %v80, %v82
    %v84 = vsel %vm72, %v62, %v65
    %v85 = vsel %vm75, %v71, 1326507024
    %v86 = vsel %vm74, %v68, %v85
    %v87 = vsel %vm73, %v84, %v86
    %v88 = vshll.u32 %v48, 8
    %v89 = vmul.u32.u64.compose %v88, %v87
    %v90 = vextract.low.u32 %v89
    %v91 = vextract.high.u32 %v89
    %v92 = vmul.u32.u64.compose %v88, %v83
    %v93 = vextract.low.u32 %v92
    %v94 = vextract.high.u32 %v92
    %v95 = vmul.u32 %v88, %v79
    %v96 = vadd.s32 %v91, %v93
    %vm97 = vc.u32 %v91, %v93
    %v98 = vadd.s32 %v94, 1
    %v99 = vsel %vm97, %v98, %v94
    %v100 = vadd.s32 %v95, %v99
    %v101 = vadd.s32 %v100, 536870912
    %v102 = vshrl.u32 %v101, 30
    %v103 = vshll.u32 %v102, 30
    %v104 = vsub.s32 %v100, %v103
    %vm105 = vcmp.lt.s32.totalorder %v104, 0
    %v106 = vsub.s32 0, %v104
    %v107 = vsel %vm105, %v106, %v104
    %v108 = vclz %v107
    %v109 = vsub.s32 %v108, 2
    %vm110 = vcmp.gt.s32.totalorder 0, %v109
    %v111 = vsel %vm110, 0, %v109
    %v112 = vsub.s32 32, %v111
    %v113 = vshll.u32 %v104, %v111
    %v114 = vshrl.u32 %v96, %v112
    %v115 = vor.u32 %v113, %v114
    %v116 = vsub.s32 4294967266, %v111
    %v117 = vadd.s32 %v116, 127
    %v118 = vshll.u32 %v117, 23
    %v119 = vor.u32 4788187, %v118
    %v120 = vand.u32 2147483647, %v119
    %v122 = vcvt.s32.f32 %v115
    %v123 = vmul.f32 %v122, %v120
    %v124 = vxor.u32 %v123, 2147483648
    %v125 = vsel %vm42, %v124, %v123
    %v126 = vsub.s32 4, %v102
    %v127 = vsel %vm42, %v126, %v102
    %v128 = vsel %vm41, %v39, %v125
    %v129 = vsel %vm41, 0, %v127
    %v130 = vcosq.f32.pop %v128
    %v131 = vsinq.f32.pop %v128
    %vm132 = vweird.f32 %v39
    %v133 = vand.u32 %v129, 3
    %vm134 = vcmp.lt.s32.totalorder %v133, 2
    %vm135 = vcmp.eq.s32.totalorder %v133, 0
    %v136 = vxor.u32 %v131, 2147483648
    %v137 = vsel %vm135, %v130, %v136
    %vm138 = vcmp.eq.s32.totalorder %v133, 2
    %v139 = vxor.u32 %v130, 2147483648
    %v140 = vsel %vm138, %v139, %v131
    %v141 = vsel %vm134, %v137, %v140
    %v142 = vsel %vm132, nan, %v141
    %v143 = vsub.f32 %v34, %v38
    %v144 = vand.u32 2147483647, %v143
    %vm145 = vcmp.le.f32.partialorder %v144, 0.7853982
    %vm146 = vcmp.lt.s32.totalorder %v143, 0
    %v147 = vand.u32 %v143, 2139095040
    %v148 = vshrl.u32 %v147, 23
    %v149 = vsub.s32 %v148, 127
    %v150 = vand.u32 2147483647, %v143
    %v151 = vand.u32 %v150, 8388607
    %v152 = vor.u32 %v151, 8388608
    %v153 = vsub.s32 0, %v152
    %v154 = vadd.s32 %v149, 1
    %vm155 = vcmp.gt.s32.totalorder %v154, 0
    %v156 = vsel %vm155, %v154, 0
    %v157 = vshrl.u32 %v156, 5
    %v158 = vand.u32 %v156, 31
    %v159 = vsub.s32 32, %v158
    %v160 = vshrl.u32 683565275, %v159
    %v161 = vshll.u32 683565275, %v158
    %v162 = vshrl.u32 2475754826, %v159
    %v163 = vor.u32 %v161, %v162
    %v164 = vshll.u32 2475754826, %v158
    %v165 = vshrl.u32 2131351028, %v159
    %v166 = vor.u32 %v164, %v165
    %v167 = vshll.u32 2131351028, %v158
    %v168 = vshrl.u32 2102212464, %v159
    %v169 = vor.u32 %v167, %v168
    %v170 = vshll.u32 2102212464, %v158
    %v171 = vshrl.u32 920167782, %v159
    %v172 = vor.u32 %v170, %v171
    %v173 = vshll.u32 920167782, %v158
    %v174 = vshrl.u32 1326507024, %v159
    %v175 = vor.u32 %v173, %v174
    %vm176 = vcmp.lt.s32.totalorder %v157, 1
    %vm177 = vcmp.lt.s32.totalorder %v157, 2
    %vm178 = vcmp.lt.s32.totalorder %v157, 3
    %vm179 = vcmp.lt.s32.totalorder %v157, 4
    %v180 = vsel %vm176, %v160, %v163
    %v181 = vsel %vm179, %v169, 2102212464
    %v182 = vsel %vm178, %v166, %v181
    %v183 = vsel %vm177, %v180, %v182
    %v184 = vsel %vm176, %v163, %v166
    %v185 = vsel %vm179, %v172, 920167782
    %v186 = vsel %vm178, %v169, %v185
    %v187 = vsel %vm177, %v184, %v186
    %v188 = vsel %vm176, %v166, %v169
    %v189 = vsel %vm179, %v175, 1326507024
    %v190 = vsel %vm178, %v172, %v189
    %v191 = vsel %vm177, %v188, %v190
    %v192 = vshll.u32 %v152, 8
    %v193 = vmul.u32.u64.compose %v192, %v191
    %v194 = vextract.low.u32 %v193
    %v195 = vextract.high.u32 %v193
    %v196 = vmul.u32.u64.compose %v192, %v187
    %v197 = vextract.low.u32 %v196
    %v198 = vextract.high.u32 %v196
    %v199 = vmul.u32 %v192, %v183
    %v200 = vadd.s32 %v195, %v197
    %vm201 = vc.u32 %v195, %v197
    %v202 = vadd.s32 %v198, 1
    %v203 = vsel %vm201, %v202, %v198
    %v204 = vadd.s32 %v199, %v203
    %v205 = vadd.s32 %v204, 536870912
    %v206 = vshrl.u32 %v205, 30
    %v207 = vshll.u32 %v206, 30
    %v208 = vsub.s32 %v204, %v207
    %vm209 = vcmp.lt.s32.totalorder %v208, 0
    %v210 = vsub.s32 0, %v208
    %v211 = vsel %vm209, %v210, %v208
    %v212 = vclz %v211
    %v213 = vsub.s32 %v212, 2
    %vm214 = vcmp.gt.s32.totalorder 0, %v213
    %v215 = vsel %vm214, 0, %v213
    %v216 = vsub.s32 32, %v215
    %v217 = vshll.u32 %v208, %v215
    %v218 = vshrl.u32 %v200, %v216
    %v219 = vor.u32 %v217, %v218
    %v220 = vsub.s32 4294967266, %v215
    %v221 = vadd.s32 %v220, 127
    %v222 = vshll.u32 %v221, 23
    %v223 = vor.u32 4788187, %v222
    %v224 = vand.u32 2147483647, %v223
    %v226 = vcvt.s32.f32 %v219
    %v227 = vmul.f32 %v226, %v224
    %v228 = vxor.u32 %v227, 2147483648
    %v229 = vsel %vm146, %v228, %v227
    %v230 = vsub.s32 4, %v206
    %v231 = vsel %vm146, %v230, %v206
    %v232 = vsel %vm145, %v143, %v229
    %v233 = vsel %vm145, 0, %v231
    %v234 = vcosq.f32.pop %v232
    %v235 = vsinq.f32.pop %v232
    %vm236 = vweird.f32 %v143
    %v237 = vand.u32 %v233, 3
    %vm238 = vcmp.lt.s32.totalorder %v237, 2
    %vm239 = vcmp.eq.s32.totalorder %v237, 0
    %v240 = vxor.u32 %v235, 2147483648
    %v241 = vsel %vm239, %v234, %v240
    %vm242 = vcmp.eq.s32.totalorder %v237, 2
    %v243 = vxor.u32 %v234, 2147483648
    %v244 = vsel %vm242, %v243, %v235
    %v245 = vsel %vm238, %v241, %v244
    %v246 = vsel %vm236, nan, %v245
    %v247 = vadd.f32 %v142, 1.0
    %v248 = vmul.f32 %v246, %v247
    %v249 = vadd.f32 %v34, %v38
    %v250 = vand.u32 2147483647, %v249
    %vm251 = vcmp.le.f32.partialorder %v250, 0.7853982
    %vm252 = vcmp.lt.s32.totalorder %v249, 0
    %v253 = vand.u32 %v249, 2139095040
    %v254 = vshrl.u32 %v253, 23
    %v255 = vsub.s32 %v254, 127
    %v256 = vand.u32 2147483647, %v249
    %v257 = vand.u32 %v256, 8388607
    %v258 = vor.u32 %v257, 8388608
    %v259 = vsub.s32 0, %v258
    %v260 = vadd.s32 %v255, 1
    %vm261 = vcmp.gt.s32.totalorder %v260, 0
    %v262 = vsel %vm261, %v260, 0
    %v263 = vshrl.u32 %v262, 5
    %v264 = vand.u32 %v262, 31
    %v265 = vsub.s32 32, %v264
    %v266 = vshrl.u32 683565275, %v265
    %v267 = vshll.u32 683565275, %v264
    %v268 = vshrl.u32 2475754826, %v265
    %v269 = vor.u32 %v267, %v268
    %v270 = vshll.u32 2475754826, %v264
    %v271 = vshrl.u32 2131351028, %v265
    %v272 = vor.u32 %v270, %v271
    %v273 = vshll.u32 2131351028, %v264
    %v274 = vshrl.u32 2102212464, %v265
    %v275 = vor.u32 %v273, %v274
    %v276 = vshll.u32 2102212464, %v264
    %v277 = vshrl.u32 920167782, %v265
    %v278 = vor.u32 %v276, %v277
    %v279 = vshll.u32 920167782, %v264
    %v280 = vshrl.u32 1326507024, %v265
    %v281 = vor.u32 %v279, %v280
    %vm282 = vcmp.lt.s32.totalorder %v263, 1
    %vm283 = vcmp.lt.s32.totalorder %v263, 2
    %vm284 = vcmp.lt.s32.totalorder %v263, 3
    %vm285 = vcmp.lt.s32.totalorder %v263, 4
    %v286 = vsel %vm282, %v266, %v269
    %v287 = vsel %vm285, %v275, 2102212464
    %v288 = vsel %vm284, %v272, %v287
    %v289 = vsel %vm283, %v286, %v288
    %v290 = vsel %vm282, %v269, %v272
    %v291 = vsel %vm285, %v278, 920167782
    %v292 = vsel %vm284, %v275, %v291
    %v293 = vsel %vm283, %v290, %v292
    %v294 = vsel %vm282, %v272, %v275
    %v295 = vsel %vm285, %v281, 1326507024
    %v296 = vsel %vm284, %v278, %v295
    %v297 = vsel %vm283, %v294, %v296
    %v298 = vshll.u32 %v258, 8
    %v299 = vmul.u32.u64.compose %v298, %v297
    %v300 = vextract.low.u32 %v299
    %v301 = vextract.high.u32 %v299
    %v302 = vmul.u32.u64.compose %v298, %v293
    %v303 = vextract.low.u32 %v302
    %v304 = vextract.high.u32 %v302
    %v305 = vmul.u32 %v298, %v289
    %v306 = vadd.s32 %v301, %v303
    %vm307 = vc.u32 %v301, %v303
    %v308 = vadd.s32 %v304, 1
    %v309 = vsel %vm307, %v308, %v304
    %v310 = vadd.s32 %v305, %v309
    %v311 = vadd.s32 %v310, 536870912
    %v312 = vshrl.u32 %v311, 30
    %v313 = vshll.u32 %v312, 30
    %v314 = vsub.s32 %v310, %v313
    %vm315 = vcmp.lt.s32.totalorder %v314, 0
    %v316 = vsub.s32 0, %v314
    %v317 = vsel %vm315, %v316, %v314
    %v318 = vclz %v317
    %v319 = vsub.s32 %v318, 2
    %vm320 = vcmp.gt.s32.totalorder 0, %v319
    %v321 = vsel %vm320, 0, %v319
    %v322 = vsub.s32 32, %v321
    %v323 = vshll.u32 %v314, %v321
    %v324 = vshrl.u32 %v306, %v322
    %v325 = vor.u32 %v323, %v324
    %v326 = vsub.s32 4294967266, %v321
    %v327 = vadd.s32 %v326, 127
    %v328 = vshll.u32 %v327, 23
    %v329 = vor.u32 4788187, %v328
    %v330 = vand.u32 2147483647, %v329
    %v332 = vcvt.s32.f32 %v325
    %v333 = vmul.f32 %v332, %v330
    %v334 = vxor.u32 %v333, 2147483648
    %v335 = vsel %vm252, %v334, %v333
    %v336 = vsub.s32 4, %v312
    %v337 = vsel %vm252, %v336, %v312
    %v338 = vsel %vm251, %v249, %v335
    %v339 = vsel %vm251, 0, %v337
    %v340 = vcosq.f32.pop %v338
    %v341 = vsinq.f32.pop %v338
    %vm342 = vweird.f32 %v249
    %v343 = vand.u32 %v339, 3
    %vm344 = vcmp.lt.s32.totalorder %v343, 2
    %vm345 = vcmp.eq.s32.totalorder %v343, 0
    %v346 = vxor.u32 %v341, 2147483648
    %v347 = vsel %vm345, %v340, %v346
    %vm348 = vcmp.eq.s32.totalorder %v343, 2
    %v349 = vxor.u32 %v340, 2147483648
    %v350 = vsel %vm348, %v349, %v341
    %v351 = vsel %vm344, %v347, %v350
    %v352 = vsel %vm342, nan, %v351
    %v353 = vsub.f32 1.0, %v142
    %v354 = vmul.f32 %v352, %v353
    %v355 = vadd.f32 %v248, %v354
    %v356 = vmul.f32 %v355, 0.5
    %v357 = vmax.f32 %v356, -0.9999999
    %v358 = vmin.f32 %v357, 0.9999999
    %v359 = vmul.f32 %v358, %v358
    %v360 = vsub.f32 1.0, %v359
    %v361 = vrsqrt.pop %v360
    %v362 = vmul.f32 %v360, %v361
    %vm363 = vcmp.eq.f32.partialorder %v360, inf
    %v364 = vsel %vm363, %v360, %v362
    %vm365 = vcmp.eq.f32.partialorder %v360, 0.0
    %v366 = vand.u32 %v360, 2147483648
    %v367 = vsel %vm365, %v366, %v364
    %v368 = vand.u32 2147483647, %v358
    %v369 = vand.u32 2147483647, %v367
    %v370 = vmin.f32 %v368, %v369
    %v371 = vmax.f32 %v368, %v369
    %v372 = vrcp.pop %v371
    %v373 = vmul.f32 %v370, %v372
    %v374 = vmul.f32 %v373, %v373
    %v375 = vmul.f32 0.002785687, %v374
    %v376 = vadd.f32 %v375, -0.015866
    %v377 = vmul.f32 %v376, %v374
    %v378 = vadd.f32 %v377, 0.04247222
    %v379 = vmul.f32 %v378, %v374
    %v380 = vadd.f32 %v379, -0.074975304
    %v381 = vmul.f32 %v380, %v374
    %v382 = vadd.f32 %v381, 0.1064488
    %v383 = vmul.f32 %v382, %v374
    %v384 = vadd.f32 %v383, -0.14207031
    %v385 = vmul.f32 %v384, %v374
    %v386 = vadd.f32 %v385, 0.19993454
    %v387 = vmul.f32 %v386, %v374
    %v388 = vadd.f32 %v387, -0.33333147
    %v389 = vmul.f32 %v388, %v374
    %v390 = vmul.f32 %v389, %v373
    %v391 = vadd.f32 %v390, %v373
    %vm392 = vcmp.gt.f32.partialorder %v369, %v368
    %v393 = vsub.f32 1.5707964, %v391
    %v394 = vsel %vm392, %v393, %v391
    %vm395 = vcmp.lt.f32.partialorder %v358, 0.0
    %v396 = vsub.f32 3.1415927, %v394
    %v397 = vsel %vm395, %v396, %v394
    %vm398 = vcmp.lt.s32.totalorder %v358, 0
    %v399 = vsel %vm398, 3.1415927, 0.0
    %vm400 = vcmp.eq.f32.partialorder %v367, 0.0
    %v401 = vsel %vm400, %v399, %v397
    %vm402 = vcmp.ne.f32.partialorder %v358, %v358
    %vm403 = vcmp.ne.f32.partialorder %v367, %v367
    %vm404 = vmor %vm402, %vm403
    %v405 = vsel %vm404, nan, %v401
    %vm406 = vcmp.lt.f32.partialorder %v358, 0.0
    %v407 = vsel %vm406, 2.3561945, 0.7853982
    %vm408 = vcmp.eq.s32.totalorder %v368, inf
    %vm409 = vcmp.eq.s32.totalorder %v369, inf
    %vm410 = vmand %vm408, %vm409
    %v411 = vsel %vm410, %v407, %v405
    %v412 = vand.u32 2147483647, %v411
    %v413 = vand.u32 %v367, 2147483648
    %v414 = vor.u32 %v412, %v413
    %v415 = vmul.f32 %v414, 57.29578
    %s416 = sadd.s32 0, 0
    %s417 = smul.u32 %s416, 1024
    %s418 = sadd.s32 %s417, 1024
    %p419 = scmp.gt.s32.totalorder %s418, 8
    %p420 = scmp.le.s32.totalorder %s418, 8
    // Predicated region
    $region14: #{tpu_custom_call.1} parent=1 // pred_check
      %p421 = pneg %p420
    $region15: #{tpu_custom_call.1} parent=1 // pred_check_branch
      %423 = sbr.rel (%p421) target = $region17
    $region16: #{tpu_custom_call.1} parent=1 // pred_region
      %v424 = vld [vmem:[#allocation2] sm:$0xff]
      %v425 = vadd.f32 %v415, 0.0
      %v426 = vadd.f32 %v424, %v425
      %427 = vst [vmem:[#allocation2] sm:$0xff] %v426
    $region17: #{tpu_custom_call.1} parent=1 // pred_fallthru
      _
    // Predicated region
    $region18: #{tpu_custom_call.1} parent=1 // pred_check
      %p428 = pneg %p419
    $region19: #{tpu_custom_call.1} parent=1 // pred_check_branch
      %430 = sbr.rel (%p428) target = $region21
    $region20: #{tpu_custom_call.1} parent=1 // pred_region
      %v431 = vlaneseq
      %v432 = vshrl.u32 %v431, 7
      %v433 = vlaneseq
      %v434 = vand.u32 %v433, 127
      %v435 = vmul.u32 %v432, 128
      %v436 = vstv %s417
      %v437 = vadd.s32 %v436, %v435
      %v438 = vadd.s32 %v437, %v434
      %vm439 = vcmp.lt.s32.totalorder %v438, 8
      %v440 = vsel %vm439, %v415, 0.0
      %v441 = vld [vmem:[#allocation2] sm:$0xff]
      %v442 = vadd.f32 %v440, 0.0
      %v443 = vadd.f32 %v441, %v442
      %444 = vst [vmem:[#allocation2] sm:$0xff] %v443
    $region21: #{tpu_custom_call.1} parent=1 // pred_fallthru
      _
    // Predicated region
    $region22: #{tpu_custom_call.1} parent=1 // pred_check
      %p445 = pneg %p27
    $region23: #{tpu_custom_call.1} parent=1 // pred_check_branch
      %447 = sbr.rel (%p445) target = $region25
    $region24: #{tpu_custom_call.1} parent=1 // pred_region
      %v448 = vld [vmem:[#allocation2] sm:$0xff]
      %449 = vst [vmem:[#allocation6] sm:$0xff] %v448
    $region25: #{tpu_custom_call.1} parent=1 // pred_fallthru
      _
    // Predicated region
    $region26: #{tpu_custom_call.1} parent=1 // pred_check
      _
    $region27: #{tpu_custom_call.1} parent=1 // pred_check_branch
      %451 = sbr.rel (0) target = $region29
    $region28: #{tpu_custom_call.1} parent=1 // pred_region
      %s453 = ssub.s32 128, 128
      %454 = vsyncadd [#allocation5], %s453
      %s456 = sshll.u32 [#allocation6], 4
      %s457 = int_to_ptr.vmem [resolvable:$true] %s456
      %459 = dma.vmem_to_hbm [thread:$0]  %s457, 128, %s1, [#allocation5]
    $region29: #{tpu_custom_call.1} parent=1 // pred_fallthru
      _
    // Predicated region
    $region30: #{tpu_custom_call.1} parent=1 // pred_check
      _
    $region31: #{tpu_custom_call.1} parent=1 // pred_check_branch
      %461 = sbr.rel (0) target = $region33
    $region32: #{tpu_custom_call.1} parent=1 // pred_region
      %462 = dma.done [#allocation5], 128
    $region33: #{tpu_custom_call.1} parent=1 // pred_fallthru
      _
    %463 = vsyncpa [#allocation4], 1
    %464 = vsyncpa [#allocation5], 1

</llo_original>
